<compile_context>
chip_gen: v6e
topology: v6e:2x2x1
jax: 0.10.0
libtpu: 0.0.40
codegen_flags: <defaults>
</compile_context>

<pallas_src>
import jax
import jax.numpy as jnp
from jax import lax
from jax.experimental import pallas as pl
from jax.experimental.pallas import tpu as pltpu


# ----------------------------------------------------------------------------
# Kernel
# ----------------------------------------------------------------------------
def _make_kernel(Bt, Hg, L):
    """Kernel closure for fixed (batch-block, folded-rows, lane) sizes."""

    def kernel(x_ref,
               w1u_ref, w1m_ref, w1d_ref, b1_ref,
               w2u_ref, w2m_ref, w2d_ref, b2_ref,
               out_ref, pad_ref):
        # x_ref   : (Bt, Hg, L)      lane-dense input tile (also the residual)
        # w*_ref  : (L, L)           band sub-blocks (up / mid / dn row-group shift)
        # b*_ref  : (1, L)           per-channel bias tiled along (row-in-group, W)
        # out_ref : (Bt, Hg, L)
        # pad_ref : (Bt, Hg+2, L)    f32 VMEM scratch with zero halo rows
        zrow = jnp.zeros((Bt, 1, L), jnp.float32)
        pad_ref[:, :1, :] = zrow           # halo above  (SAME padding, H dir)
        pad_ref[:, Hg + 1:, :] = zrow      # halo below

        def conv(wu_ref, wm_ref, wd_ref, b_ref):
            up = pad_ref[:, 0:Hg, :].reshape(Bt * Hg, L)        # row-group p-1
            mid = pad_ref[:, 1:Hg + 1, :].reshape(Bt * Hg, L)   # row-group p
            dn = pad_ref[:, 2:Hg + 2, :].reshape(Bt * Hg, L)    # row-group p+1
            y = jnp.dot(mid, wm_ref[...], preferred_element_type=jnp.float32)
            y = y + jnp.dot(up, wu_ref[...], preferred_element_type=jnp.float32)
            y = y + jnp.dot(dn, wd_ref[...], preferred_element_type=jnp.float32)
            y = y + b_ref[...]
            return y.reshape(Bt, Hg, L)

        x = x_ref[...].astype(jnp.float32)
        pad_ref[:, 1:Hg + 1, :] = x
        h = jnp.maximum(conv(w1u_ref, w1m_ref, w1d_ref, b1_ref), 0.0)  # conv1+ReLU
        pad_ref[:, 1:Hg + 1, :] = h
        y = conv(w2u_ref, w2m_ref, w2d_ref, b2_ref)                    # conv2
        out_ref[...] = (y + x).astype(out_ref.dtype)                   # + residual

    return kernel


# ----------------------------------------------------------------------------
# Weight / layout preprocessing (runs once, outside the kernel)
# ----------------------------------------------------------------------------
def _band_weights(w_oihw, W, g):
    """(Cout,Cin,3,3) OIHW -> three (g*W*C, g*W*C) band matrices (up/mid/dn).

    Lane layout inside a row-group: (row_in_group, w, c), c fastest.
    Row index = (ri, xin, ci) of the input group, col index = (ro, xout, co)
    of the output group; entry = w[kh, kw, ci, co] with
      kh = g*shift + ri - ro + 1,  kw = xin - xout + 1
    when the tap exists, else 0.  W-direction SAME padding is absorbed in the
    band; H-direction SAME padding comes from the zero halo rows.
    """
    C = w_oihw.shape[1]
    w_hwio = jnp.transpose(w_oihw, (2, 3, 1, 0)).astype(jnp.float32)  # (3,3,Ci,Co)
    ri = jnp.arange(g)[:, None, None, None]
    ro = jnp.arange(g)[None, :, None, None]
    xin = jnp.arange(W)[None, None, :, None]
    xout = jnp.arange(W)[None, None, None, :]
    kw = xin - xout + 1
    kw_ok = (kw >= 0) & (kw <= 2)
    kw_c = jnp.clip(kw, 0, 2)

    mats = []
    for shift in (-1, 0, 1):                      # up / mid / dn row-group
        kh = g * shift + ri - ro + 1
        kh_ok = (kh >= 0) & (kh <= 2)
        kh_c = jnp.clip(kh, 0, 2)
        taps = w_hwio[kh_c, kw_c]                 # (g,g,W,W,Ci,Co)
        taps = jnp.where((kh_ok & kw_ok)[..., None, None], taps, 0.0)
        # (ri, xin, ci) rows, (ro, xout, co) cols
        m = jnp.transpose(taps, (0, 2, 4, 1, 3, 5)).reshape(g * W * C, g * W * C)
        mats.append(m)
    return mats  # [W_up, W_mid, W_dn]


def _pick_row_fold(H, W, C):
    """Smallest g with (g*W*C) % 128 == 0 and H % g == 0 (lane-dense stores)."""
    lane = W * C
    if lane % 128 == 0:
        return 1
    for g in range(1, H + 1):
        if H % g == 0 and (g * lane) % 128 == 0:
            return g
    return 1  # fall back to masked stores (still correct)


def _vmem_budget_bytes():
    """Generation-aware scoped-VMEM budget (conservative, with headroom)."""
    try:
        cap = int(pltpu.get_tpu_info().vmem_capacity_bytes)
    except Exception:
        cap = 64 << 20  # assume the smallest (v7x per-TC) if query unavailable
    return int(max(16 << 20, min(cap // 2, 48 << 20)))


# ----------------------------------------------------------------------------
# Wrappers
# ----------------------------------------------------------------------------
def residual_block_pallas_nhwc(x_nhwc, w1_oihw, b1, w2_oihw, b2):
    """Pallas forward of ResidualBlock on NHWC activations (no transposes)."""
    B, H, W, C = x_nhwc.shape
    g = _pick_row_fold(H, W, C)
    Hg = H // g
    L = g * W * C

    # NHWC -> (B, H/g, g*W*C): contiguous reshape, zero HBM layout cost.
    x_flat = x_nhwc.reshape(B, Hg, L)

    w1u, w1m, w1d = _band_weights(w1_oihw, W, g)
    w2u, w2m, w2d = _band_weights(w2_oihw, W, g)
    b1_t = jnp.tile(b1.astype(jnp.float32), g * W).reshape(1, L)
    b2_t = jnp.tile(b2.astype(jnp.float32), g * W).reshape(1, L)

    # --- VMEM-aware batch blocking; aim for a grid of ~8 steps so the BlockSpec
    # pipeline overlaps DMA with compute and v7x's 2 TCs both get work. -------
    vmem_budget = _vmem_budget_bytes()
    weight_bytes = 2 * (6 * L * L + 2 * L) * 4        # double-buffered weight operands
    act_budget = max(vmem_budget - weight_bytes, 1 << 20)
    bytes_per_b = 12 * Hg * L * 4                     # in/out double-buffers + scratch
                                                      # + f32 intermediates (x, h, y, dots)
    Bt = int(max(1, min(B, act_budget // bytes_per_b, pl.cdiv(B, 8))))
    grid = (pl.cdiv(B, Bt),)

    kernel = _make_kernel(Bt, Hg, L)
    xspec = pl.BlockSpec((Bt, Hg, L), lambda i: (i, 0, 0))
    wspec = pl.BlockSpec((L, L), lambda i: (0, 0))
    bspec = pl.BlockSpec((1, L), lambda i: (0, 0))

    out_flat = pl.pallas_call(
        kernel,
        out_shape=jax.ShapeDtypeStruct((B, Hg, L), x_flat.dtype),
        grid_spec=pltpu.PrefetchScalarGridSpec(
            num_scalar_prefetch=0,
            grid=grid,
            in_specs=[xspec, wspec, wspec, wspec, bspec,
                      wspec, wspec, wspec, bspec],
            out_specs=xspec,
            scratch_shapes=[pltpu.VMEM((Bt, Hg + 2, L), jnp.float32)],
        ),
        compiler_params=pltpu.CompilerParams(
            dimension_semantics=("parallel",),
            vmem_limit_bytes=vmem_budget,
        ),
    )(x_flat, w1u, w1m, w1d, b1_t, w2u, w2m, w2d, b2_t)

    return out_flat.reshape(B, H, W, C)


def residual_block_pallas_nchw(x_nchw, w1_oihw, b1, w2_oihw, b2):
    """Drop-in PyTorch-layout adapter (costs two extra HBM passes).

    Prefer keeping the surrounding model in NHWC and calling the NHWC entry.
    """
    x_nhwc = jnp.transpose(x_nchw, (0, 2, 3, 1))
    y = residual_block_pallas_nhwc(x_nhwc, w1_oihw, b1, w2_oihw, b2)
    return jnp.transpose(y, (0, 3, 1, 2))


def residual_block_reference_nhwc(x, w1_oihw, b1, w2_oihw, b2):
    """Pure-JAX reference (matches the torch module's math) for verification."""
    dn = ('NHWC', 'HWIO', 'NHWC')
    w1 = jnp.transpose(w1_oihw, (2, 3, 1, 0))
    w2 = jnp.transpose(w2_oihw, (2, 3, 1, 0))
    y = lax.conv_general_dilated(x, w1, (1, 1), 'SAME', dimension_numbers=dn)
    y = y + b1[None, None, None, :]
    y = jnp.maximum(y, 0.0)
    y = lax.conv_general_dilated(y, w2, (1, 1), 'SAME', dimension_numbers=dn)
    y = y + b2[None, None, None, :]
    return y + x


# ----------------------------------------------------------------------------
# Demo / correctness check
# ----------------------------------------------------------------------------
if __name__ == "__main__":
    B, C, H, W = 2, 4, 16, 16

    key = jax.random.PRNGKey(0)
    kx, kw1, kb1, kw2, kb2 = jax.random.split(key, 5)

    # PyTorch Conv2d-like uniform init bound 1/sqrt(fan_in).
    fan_in = C * 3 * 3
    bound = 1.0 / (fan_in ** 0.5)
    x_nhwc = jax.random.normal(kx, (B, H, W, C), dtype=jnp.float32)
    w1 = jax.random.uniform(kw1, (C, C, 3, 3), jnp.float32, -bound, bound)
    b1 = jax.random.uniform(kb1, (C,), jnp.float32, -bound, bound)
    w2 = jax.random.uniform(kw2, (C, C, 3, 3), jnp.float32, -bound, bound)
    b2 = jax.random.uniform(kb2, (C,), jnp.float32, -bound, bound)

    out = jax.block_until_ready(residual_block_pallas_nhwc(x_nhwc, w1, b1, w2, b2))
    ref = jax.block_until_ready(residual_block_reference_nhwc(x_nhwc, w1, b1, w2, b2))
    assert out.shape == (B, H, W, C)
    assert jnp.allclose(out, ref, atol=1e-4, rtol=1e-4), "NHWC mismatch vs reference"

    # PyTorch-layout adapter (same math, layout plumbing only).
    x_nchw = jnp.transpose(x_nhwc, (0, 3, 1, 2))
    out_nchw = jax.block_until_ready(
        residual_block_pallas_nchw(x_nchw, w1, b1, w2, b2))
    assert jnp.allclose(out_nchw, jnp.transpose(ref, (0, 3, 1, 2)),
                        atol=1e-4, rtol=1e-4), "NCHW adapter mismatch"

    print("KERNEL_OK")
</pallas_src>

<mosaic_0001>
module attributes {stable_mosaic.version = 11 : i64} {
  func.func @kernel(%arg0: i32, %arg1: memref<1x8x128xf32, #tpu.memory_space<vmem>>, %arg2: memref<128x128xf32, #tpu.memory_space<vmem>>, %arg3: memref<128x128xf32, #tpu.memory_space<vmem>>, %arg4: memref<128x128xf32, #tpu.memory_space<vmem>>, %arg5: memref<1x128xf32, #tpu.memory_space<vmem>>, %arg6: memref<128x128xf32, #tpu.memory_space<vmem>>, %arg7: memref<128x128xf32, #tpu.memory_space<vmem>>, %arg8: memref<128x128xf32, #tpu.memory_space<vmem>>, %arg9: memref<1x128xf32, #tpu.memory_space<vmem>>, %arg10: memref<1x8x128xf32, #tpu.memory_space<vmem>>, %arg11: memref<1x10x128xf32, #tpu.memory_space<vmem>>) attributes {dimension_semantics = [#tpu.dimension_semantics<parallel>], iteration_bounds = array<i64: 2>, scalar_prefetch = 0 : i64, scratch_operands = 1 : i64, tpu.core_type = #tpu.core_type<tc>, window_params = [{transform_indices = @transform_0, window_bounds = array<i64: 1, 8, 128>}, {pipeline_mode = #tpu.pipeline_mode<synchronous>, transform_indices = @transform_1, window_bounds = array<i64: 128, 128>}, {pipeline_mode = #tpu.pipeline_mode<synchronous>, transform_indices = @transform_2, window_bounds = array<i64: 128, 128>}, {pipeline_mode = #tpu.pipeline_mode<synchronous>, transform_indices = @transform_3, window_bounds = array<i64: 128, 128>}, {pipeline_mode = #tpu.pipeline_mode<synchronous>, transform_indices = @transform_4, window_bounds = array<i64: 1, 128>}, {pipeline_mode = #tpu.pipeline_mode<synchronous>, transform_indices = @transform_5, window_bounds = array<i64: 128, 128>}, {pipeline_mode = #tpu.pipeline_mode<synchronous>, transform_indices = @transform_6, window_bounds = array<i64: 128, 128>}, {pipeline_mode = #tpu.pipeline_mode<synchronous>, transform_indices = @transform_7, window_bounds = array<i64: 128, 128>}, {pipeline_mode = #tpu.pipeline_mode<synchronous>, transform_indices = @transform_8, window_bounds = array<i64: 1, 128>}, {transform_indices = @transform_9, window_bounds = array<i64: 1, 8, 128>}]} {
    %cst = arith.constant 0.000000e+00 : f32
    %0 = vector.broadcast %cst : f32 to vector<1x1x128xf32>
    %c0 = arith.constant 0 : index
    %c0_0 = arith.constant 0 : index
    %c0_1 = arith.constant 0 : index
    %1 = vector.load %arg11[%c0, %c0_0, %c0_1] : memref<1x10x128xf32, #tpu.memory_space<vmem>>, vector<1x1x128xf32>
    tpu.vector_store %arg11[%c0, %c0_0, %c0_1], %0 {strides = array<i32>} : memref<1x10x128xf32, #tpu.memory_space<vmem>>, vector<1x1x128xf32>,
    %c0_2 = arith.constant 0 : index
    %c9 = arith.constant 9 : index
    %c0_3 = arith.constant 0 : index
    %2 = vector.load %arg11[%c0_2, %c9, %c0_3] : memref<1x10x128xf32, #tpu.memory_space<vmem>>, vector<1x1x128xf32>
    tpu.vector_store %arg11[%c0_2, %c9, %c0_3], %0 {strides = array<i32>} : memref<1x10x128xf32, #tpu.memory_space<vmem>>, vector<1x1x128xf32>,
    %c0_4 = arith.constant 0 : index
    %c0_5 = arith.constant 0 : index
    %c0_6 = arith.constant 0 : index
    %3 = vector.load %arg1[%c0_4, %c0_5, %c0_6] : memref<1x8x128xf32, #tpu.memory_space<vmem>>, vector<1x8x128xf32>
    %c0_7 = arith.constant 0 : index
    %c1 = arith.constant 1 : index
    %c0_8 = arith.constant 0 : index
    %4 = vector.load %arg11[%c0_7, %c1, %c0_8] : memref<1x10x128xf32, #tpu.memory_space<vmem>>, vector<1x8x128xf32>
    tpu.vector_store %arg11[%c0_7, %c1, %c0_8], %3 {strides = array<i32>} : memref<1x10x128xf32, #tpu.memory_space<vmem>>, vector<1x8x128xf32>,
    %c0_9 = arith.constant 0 : index
    %c0_10 = arith.constant 0 : index
    %c0_11 = arith.constant 0 : index
    %5 = vector.load %arg11[%c0_9, %c0_10, %c0_11] : memref<1x10x128xf32, #tpu.memory_space<vmem>>, vector<1x8x128xf32>
    %6 = vector.shape_cast %5 : vector<1x8x128xf32> to vector<8x128xf32>
    %c0_12 = arith.constant 0 : index
    %c1_13 = arith.constant 1 : index
    %c0_14 = arith.constant 0 : index
    %7 = vector.load %arg11[%c0_12, %c1_13, %c0_14] : memref<1x10x128xf32, #tpu.memory_space<vmem>>, vector<1x8x128xf32>
    %8 = vector.shape_cast %7 : vector<1x8x128xf32> to vector<8x128xf32>
    %c0_15 = arith.constant 0 : index
    %c2 = arith.constant 2 : index
    %c0_16 = arith.constant 0 : index
    %9 = vector.load %arg11[%c0_15, %c2, %c0_16] : memref<1x10x128xf32, #tpu.memory_space<vmem>>, vector<1x8x128xf32>
    %10 = vector.shape_cast %9 : vector<1x8x128xf32> to vector<8x128xf32>
    %c0_17 = arith.constant 0 : index
    %c0_18 = arith.constant 0 : index
    %11 = vector.load %arg3[%c0_17, %c0_18] : memref<128x128xf32, #tpu.memory_space<vmem>>, vector<128x128xf32>
    %cst_19 = arith.constant dense<0.000000e+00> : vector<8x128xf32>
    %12 = tpu.matmul %8, %11, %cst_19 {dimension_numbers = #tpu.dot_dimension_numbers<[1], [0], [0], [1], [0, 0, 1, 1], [], []>} : vector<8x128xf32>, vector<128x128xf32>, vector<8x128xf32> -> vector<8x128xf32>
    %c0_20 = arith.constant 0 : index
    %c0_21 = arith.constant 0 : index
    %13 = vector.load %arg2[%c0_20, %c0_21] : memref<128x128xf32, #tpu.memory_space<vmem>>, vector<128x128xf32>
    %cst_22 = arith.constant dense<0.000000e+00> : vector<8x128xf32>
    %14 = tpu.matmul %6, %13, %cst_22 {dimension_numbers = #tpu.dot_dimension_numbers<[1], [0], [0], [1], [0, 0, 1, 1], [], []>} : vector<8x128xf32>, vector<128x128xf32>, vector<8x128xf32> -> vector<8x128xf32>
    %15 = arith.addf %12, %14 : vector<8x128xf32>
    %c0_23 = arith.constant 0 : index
    %c0_24 = arith.constant 0 : index
    %16 = vector.load %arg4[%c0_23, %c0_24] : memref<128x128xf32, #tpu.memory_space<vmem>>, vector<128x128xf32>
    %cst_25 = arith.constant dense<0.000000e+00> : vector<8x128xf32>
    %17 = tpu.matmul %10, %16, %cst_25 {dimension_numbers = #tpu.dot_dimension_numbers<[1], [0], [0], [1], [0, 0, 1, 1], [], []>} : vector<8x128xf32>, vector<128x128xf32>, vector<8x128xf32> -> vector<8x128xf32>
    %18 = arith.addf %15, %17 : vector<8x128xf32>
    %c0_26 = arith.constant 0 : index
    %c0_27 = arith.constant 0 : index
    %19 = vector.load %arg5[%c0_26, %c0_27] : memref<1x128xf32, #tpu.memory_space<vmem>>, vector<1x128xf32>
    %20 = vector.broadcast %19 : vector<1x128xf32> to vector<8x128xf32>
    %21 = arith.addf %18, %20 : vector<8x128xf32>
    %22 = vector.shape_cast %21 : vector<8x128xf32> to vector<1x8x128xf32>
    %cst_28 = arith.constant 0.000000e+00 : f32
    %23 = vector.broadcast %cst_28 : f32 to vector<1x8x128xf32>
    %24 = arith.maximumf %22, %23 : vector<1x8x128xf32>
    %c0_29 = arith.constant 0 : index
    %c1_30 = arith.constant 1 : index
    %c0_31 = arith.constant 0 : index
    %25 = vector.load %arg11[%c0_29, %c1_30, %c0_31] : memref<1x10x128xf32, #tpu.memory_space<vmem>>, vector<1x8x128xf32>
    tpu.vector_store %arg11[%c0_29, %c1_30, %c0_31], %24 {strides = array<i32>} : memref<1x10x128xf32, #tpu.memory_space<vmem>>, vector<1x8x128xf32>,
    %c0_32 = arith.constant 0 : index
    %c0_33 = arith.constant 0 : index
    %c0_34 = arith.constant 0 : index
    %26 = vector.load %arg11[%c0_32, %c0_33, %c0_34] : memref<1x10x128xf32, #tpu.memory_space<vmem>>, vector<1x8x128xf32>
    %27 = vector.shape_cast %26 : vector<1x8x128xf32> to vector<8x128xf32>
    %c0_35 = arith.constant 0 : index
    %c1_36 = arith.constant 1 : index
    %c0_37 = arith.constant 0 : index
    %28 = vector.load %arg11[%c0_35, %c1_36, %c0_37] : memref<1x10x128xf32, #tpu.memory_space<vmem>>, vector<1x8x128xf32>
    %29 = vector.shape_cast %28 : vector<1x8x128xf32> to vector<8x128xf32>
    %c0_38 = arith.constant 0 : index
    %c2_39 = arith.constant 2 : index
    %c0_40 = arith.constant 0 : index
    %30 = vector.load %arg11[%c0_38, %c2_39, %c0_40] : memref<1x10x128xf32, #tpu.memory_space<vmem>>, vector<1x8x128xf32>
    %31 = vector.shape_cast %30 : vector<1x8x128xf32> to vector<8x128xf32>
    %c0_41 = arith.constant 0 : index
    %c0_42 = arith.constant 0 : index
    %32 = vector.load %arg7[%c0_41, %c0_42] : memref<128x128xf32, #tpu.memory_space<vmem>>, vector<128x128xf32>
    %cst_43 = arith.constant dense<0.000000e+00> : vector<8x128xf32>
    %33 = tpu.matmul %29, %32, %cst_43 {dimension_numbers = #tpu.dot_dimension_numbers<[1], [0], [0], [1], [0, 0, 1, 1], [], []>} : vector<8x128xf32>, vector<128x128xf32>, vector<8x128xf32> -> vector<8x128xf32>
    %c0_44 = arith.constant 0 : index
    %c0_45 = arith.constant 0 : index
    %34 = vector.load %arg6[%c0_44, %c0_45] : memref<128x128xf32, #tpu.memory_space<vmem>>, vector<128x128xf32>
    %cst_46 = arith.constant dense<0.000000e+00> : vector<8x128xf32>
    %35 = tpu.matmul %27, %34, %cst_46 {dimension_numbers = #tpu.dot_dimension_numbers<[1], [0], [0], [1], [0, 0, 1, 1], [], []>} : vector<8x128xf32>, vector<128x128xf32>, vector<8x128xf32> -> vector<8x128xf32>
    %36 = arith.addf %33, %35 : vector<8x128xf32>
    %c0_47 = arith.constant 0 : index
    %c0_48 = arith.constant 0 : index
    %37 = vector.load %arg8[%c0_47, %c0_48] : memref<128x128xf32, #tpu.memory_space<vmem>>, vector<128x128xf32>
    %cst_49 = arith.constant dense<0.000000e+00> : vector<8x128xf32>
    %38 = tpu.matmul %31, %37, %cst_49 {dimension_numbers = #tpu.dot_dimension_numbers<[1], [0], [0], [1], [0, 0, 1, 1], [], []>} : vector<8x128xf32>, vector<128x128xf32>, vector<8x128xf32> -> vector<8x128xf32>
    %39 = arith.addf %36, %38 : vector<8x128xf32>
    %c0_50 = arith.constant 0 : index
    %c0_51 = arith.constant 0 : index
    %40 = vector.load %arg9[%c0_50, %c0_51] : memref<1x128xf32, #tpu.memory_space<vmem>>, vector<1x128xf32>
    %41 = vector.broadcast %40 : vector<1x128xf32> to vector<8x128xf32>
    %42 = arith.addf %39, %41 : vector<8x128xf32>
    %43 = vector.shape_cast %42 : vector<8x128xf32> to vector<1x8x128xf32>
    %44 = arith.addf %43, %3 : vector<1x8x128xf32>
    %c0_52 = arith.constant 0 : index
    %c0_53 = arith.constant 0 : index
    %c0_54 = arith.constant 0 : index
    %45 = vector.load %arg10[%c0_52, %c0_53, %c0_54] : memref<1x8x128xf32, #tpu.memory_space<vmem>>, vector<1x8x128xf32>
    tpu.vector_store %arg10[%c0_52, %c0_53, %c0_54], %44 {strides = array<i32>} : memref<1x8x128xf32, #tpu.memory_space<vmem>>, vector<1x8x128xf32>,
    return
  }
  func.func @transform_0(%arg0: i32) -> (i32, i32, i32) {
    %c0_i32 = arith.constant 0 : i32
    %c0_i32_0 = arith.constant 0 : i32
    %c0_i32_1 = arith.constant 0 : i32
    return %arg0, %c0_i32, %c0_i32_0 : i32, i32, i32
  }
  func.func @transform_1(%arg0: i32) -> (i32, i32) {
    %c0_i32 = arith.constant 0 : i32
    %c0_i32_0 = arith.constant 0 : i32
    %c0_i32_1 = arith.constant 0 : i32
    return %c0_i32, %c0_i32_0 : i32, i32
  }
  func.func @transform_2(%arg0: i32) -> (i32, i32) {
    %c0_i32 = arith.constant 0 : i32
    %c0_i32_0 = arith.constant 0 : i32
    %c0_i32_1 = arith.constant 0 : i32
    return %c0_i32, %c0_i32_0 : i32, i32
  }
  func.func @transform_3(%arg0: i32) -> (i32, i32) {
    %c0_i32 = arith.constant 0 : i32
    %c0_i32_0 = arith.constant 0 : i32
    %c0_i32_1 = arith.constant 0 : i32
    return %c0_i32, %c0_i32_0 : i32, i32
  }
  func.func @transform_4(%arg0: i32) -> (i32, i32) {
    %c0_i32 = arith.constant 0 : i32
    %c0_i32_0 = arith.constant 0 : i32
    %c0_i32_1 = arith.constant 0 : i32
    return %c0_i32, %c0_i32_0 : i32, i32
  }
  func.func @transform_5(%arg0: i32) -> (i32, i32) {
    %c0_i32 = arith.constant 0 : i32
    %c0_i32_0 = arith.constant 0 : i32
    %c0_i32_1 = arith.constant 0 : i32
    return %c0_i32, %c0_i32_0 : i32, i32
  }
  func.func @transform_6(%arg0: i32) -> (i32, i32) {
    %c0_i32 = arith.constant 0 : i32
    %c0_i32_0 = arith.constant 0 : i32
    %c0_i32_1 = arith.constant 0 : i32
    return %c0_i32, %c0_i32_0 : i32, i32
  }
  func.func @transform_7(%arg0: i32) -> (i32, i32) {
    %c0_i32 = arith.constant 0 : i32
    %c0_i32_0 = arith.constant 0 : i32
    %c0_i32_1 = arith.constant 0 : i32
    return %c0_i32, %c0_i32_0 : i32, i32
  }
  func.func @transform_8(%arg0: i32) -> (i32, i32) {
    %c0_i32 = arith.constant 0 : i32
    %c0_i32_0 = arith.constant 0 : i32
    %c0_i32_1 = arith.constant 0 : i32
    return %c0_i32, %c0_i32_0 : i32, i32
  }
  func.func @transform_9(%arg0: i32) -> (i32, i32, i32) {
    %c0_i32 = arith.constant 0 : i32
    %c0_i32_0 = arith.constant 0 : i32
    %c0_i32_1 = arith.constant 0 : i32
    return %arg0, %c0_i32, %c0_i32_0 : i32, i32, i32
  }
}

</mosaic_0001>

<llo_original>
// kernel: tpu_custom_call.1
$region0: #{tpu_custom_call.1}
  #allocation0 [shape = 'u32[]', space=smem, size = 0x4, offset = 0x4, fixed_abs, tag = 'smem constant byte address 0x4 - core index']
  #allocation1 [shape = 'u32[144,128]{1,0:T(1,128)}', space=vmem, size = 0x12000, scoped, tag = 'internal scratch']
  #allocation2 [shape = 'f32[1,10,128]{2,1,0:T(8,128)}', space=vmem, size = 0x2000, scoped, tag = 'scratch operand']
  %s0 = inlined_call_operand.hbm [shape: f32[2,8,128], index: 0, kind: input, shape index: {}]
  %s1 = inlined_call_operand.hbm [shape: f32[128,128], index: 1, kind: input, shape index: {}]
  %s2 = inlined_call_operand.hbm [shape: f32[128,128], index: 2, kind: input, shape index: {}]
  %s3 = inlined_call_operand.hbm [shape: f32[128,128], index: 3, kind: input, shape index: {}]
  %s4 = inlined_call_operand.vmem [shape: f32[1,128], index: 4, kind: input, shape index: {}]
  %s5 = inlined_call_operand.hbm [shape: f32[128,128], index: 5, kind: input, shape index: {}]
  %s6 = inlined_call_operand.hbm [shape: f32[128,128], index: 6, kind: input, shape index: {}]
  %s7 = inlined_call_operand.hbm [shape: f32[128,128], index: 7, kind: input, shape index: {}]
  %s8 = inlined_call_operand.vmem [shape: f32[1,128], index: 8, kind: input, shape index: {}]
  %s9 = inlined_call_operand.hbm [shape: f32[2,8,128], index: 9, kind: output, shape index: {}]
  %s10 = sld [smem:[#allocation0]]
  $region97: #{tpu_custom_call.1} parent=0
    _
  %s12 = ssub.s32 1, %s10
  %s13 = scalar_select 0, %s12, %s10
  $region1: #{tpu_custom_call.1} parent=0
    #allocation3 [shape = 'u8[8192]{0}', space=vmem, size = 0x2000, scoped, tag = 'input window, operand 0']
    #allocation4 [shape = 's32[2]{0}', space=sflag, size = 0x8, scoped, tag = 'scoped memory for tpu_custom_call.1']
    #allocation5 [shape = 's32[2]{0}', space=sflag, size = 0x8, scoped, tag = 'scoped memory for tpu_custom_call.1']
    #allocation6 [shape = 'u8[65536]{0}', space=vmem, size = 0x10000, scoped, tag = 'input window, operand 1, single buffered']
    #allocation7 [shape = 's32[1]{0}', space=sflag, size = 0x4, scoped, tag = 'scoped memory for tpu_custom_call.1']
    #allocation8 [shape = 'u8[65536]{0}', space=vmem, size = 0x10000, scoped, tag = 'input window, operand 2, single buffered']
    #allocation9 [shape = 'u8[65536]{0}', space=vmem, size = 0x10000, scoped, tag = 'input window, operand 3, single buffered']
    #allocation10 [shape = 's32[1]{0}', space=sflag, size = 0x4, scoped, tag = 'scoped memory for tpu_custom_call.1']
    #allocation11 [shape = 'u8[65536]{0}', space=vmem, size = 0x10000, scoped, tag = 'input window, operand 5, single buffered']
    #allocation12 [shape = 'u8[65536]{0}', space=vmem, size = 0x10000, scoped, tag = 'input window, operand 6, single buffered']
    #allocation13 [shape = 's32[1]{0}', space=sflag, size = 0x4, scoped, tag = 'scoped memory for tpu_custom_call.1']
    #allocation14 [shape = 'u8[65536]{0}', space=vmem, size = 0x10000, scoped, tag = 'input window, operand 7, single buffered']
    #allocation15 [shape = 'u8[8192]{0}', space=vmem, size = 0x2000, scoped, tag = 'output window, operand 0']
    %14 = vsyncpa [#allocation4], 0
    %s15 = scalar_lea.sflag [#allocation4], 1
    %16 = vsyncpa %s15, 0
    %17 = vsyncpa [#allocation7], 0
    %18 = vsyncpa [#allocation10], 0
    %19 = vsyncpa [#allocation13], 0
    %20 = vsyncpa [#allocation5], 0
    %s21 = scalar_lea.sflag [#allocation5], 1
    %22 = vsyncpa %s21, 0
    loop: start=0, step=1, limit=4
    $region2: #{tpu_custom_call.1} parent=1 // loop_pre_header
      _
    $region3: #{tpu_custom_call.1} parent=1 // loop_header
      %s24 = sphi 0, %s28
      %p25 = scmp.ge.s32.totalorder %s24, 4
      %s34 = sphi 0, %s36
      %s37 = sphi 0, %s34
      %s38 = sphi 0, %s37
      %s54 = sphi 0, %s38
      %s58 = sphi 0, %s58
      %s60 = sphi 0, %s58
      %s61 = sphi 0, %s60
      %s75 = sphi 0, %s61
      %s79 = sphi 0, %s79
      %s81 = sphi 0, %s79
      %s82 = sphi 0, %s81
      %s96 = sphi 0, %s82
      %s100 = sphi 0, %s100
      %s102 = sphi 0, %s100
      %s103 = sphi 0, %s102
      %s117 = sphi 0, %s103
      %s121 = sphi 0, %s121
      %s123 = sphi 0, %s121
      %s124 = sphi 0, %s123
      %s138 = sphi 0, %s124
      %s142 = sphi 0, %s142
      %s144 = sphi 0, %s142
      %s145 = sphi 0, %s144
      %s159 = sphi 0, %s145
      %s163 = sphi 0, %s163
      %s165 = sphi 0, %s163
      %s166 = sphi 0, %s165
      %s180 = sphi 0, %s166
      %s184 = sphi 0, %s184
      %s186 = sphi 0, %s184
      %s187 = sphi 0, %s186
      %s201 = sphi 0, %s187
      %s205 = sphi 0, %s205
      %s207 = sphi 0, %s205
      %s208 = sphi 0, %s207
      %s222 = sphi 0, %s208
      %s228 = sphi 0, %s230
      %s231 = sphi 0, %s228
      %s232 = sphi 0, %s231
      %s248 = sphi 0, %s232
    $region4: #{tpu_custom_call.1} parent=1 // loop_header_branch
      %27 = sbr.rel (%p25) target = $region8
    $region5: #{tpu_custom_call.1} parent=1 // loop_body
      %s29 = ssub.s32 %s24, 1
      %s30 = ssub.s32 %s24, 2
      %s31 = sadd.s32 %s24, 1
      %s32 = ssub.s32 %s24, %s31
      %p33 = scmp.eq.s32.totalorder %s32, 0
      %s35 = sadd.s32 %s34, 1
      %s36 = scalar_select %p33, %s34, %s35
      %p39 = pneg %p33
      %p40 = scmp.eq.s32.totalorder %s24, 1
      %p41 = por %p39, %p40
      %p42 = scmp.ne.s32.totalorder %s34, %s37
      %p43 = scmp.eq.s32.totalorder %s24, 0
      %p44 = por %p42, %p43
      %p45 = scmp.ne.s32.totalorder %s34, %s37
      %p46 = scmp.eq.s32.totalorder %s29, 1
      %p47 = por %p45, %p46
      %p48 = scmp.ne.s32.totalorder %s37, %s38
      %p49 = scmp.eq.s32.totalorder %s29, 0
      %p50 = por %p48, %p49
      %p51 = scmp.ne.s32.totalorder %s37, %s38
      %p52 = scmp.eq.s32.totalorder %s30, 1
      %p53 = por %p51, %p52
      %p55 = scmp.ne.s32.totalorder %s38, %s54
      %p56 = scmp.eq.s32.totalorder %s30, 0
      %p57 = por %p55, %p56
      %s59 = sadd.s32 %s58, 1
      %p62 = scmp.eq.s32.totalorder %s24, 1
      %p63 = scmp.ne.s32.totalorder %s58, %s60
      %p64 = scmp.eq.s32.totalorder %s24, 0
      %p65 = por %p63, %p64
      %p66 = scmp.ne.s32.totalorder %s58, %s60
      %p67 = scmp.eq.s32.totalorder %s29, 1
      %p68 = por %p66, %p67
      %p69 = scmp.ne.s32.totalorder %s60, %s61
      %p70 = scmp.eq.s32.totalorder %s29, 0
      %p71 = por %p69, %p70
      %p72 = scmp.ne.s32.totalorder %s60, %s61
      %p73 = scmp.eq.s32.totalorder %s30, 1
      %p74 = por %p72, %p73
      %p76 = scmp.ne.s32.totalorder %s61, %s75
      %p77 = scmp.eq.s32.totalorder %s30, 0
      %p78 = por %p76, %p77
      %s80 = sadd.s32 %s79, 1
      %p83 = scmp.eq.s32.totalorder %s24, 1
      %p84 = scmp.ne.s32.totalorder %s79, %s81
      %p85 = scmp.eq.s32.totalorder %s24, 0
      %p86 = por %p84, %p85
      %p87 = scmp.ne.s32.totalorder %s79, %s81
      %p88 = scmp.eq.s32.totalorder %s29, 1
      %p89 = por %p87, %p88
      %p90 = scmp.ne.s32.totalorder %s81, %s82
      %p91 = scmp.eq.s32.totalorder %s29, 0
      %p92 = por %p90, %p91
      %p93 = scmp.ne.s32.totalorder %s81, %s82
      %p94 = scmp.eq.s32.totalorder %s30, 1
      %p95 = por %p93, %p94
      %p97 = scmp.ne.s32.totalorder %s82, %s96
      %p98 = scmp.eq.s32.totalorder %s30, 0
      %p99 = por %p97, %p98
      %s101 = sadd.s32 %s100, 1
      %p104 = scmp.eq.s32.totalorder %s24, 1
      %p105 = scmp.ne.s32.totalorder %s100, %s102
      %p106 = scmp.eq.s32.totalorder %s24, 0
      %p107 = por %p105, %p106
      %p108 = scmp.ne.s32.totalorder %s100, %s102
      %p109 = scmp.eq.s32.totalorder %s29, 1
      %p110 = por %p108, %p109
      %p111 = scmp.ne.s32.totalorder %s102, %s103
      %p112 = scmp.eq.s32.totalorder %s29, 0
      %p113 = por %p111, %p112
      %p114 = scmp.ne.s32.totalorder %s102, %s103
      %p115 = scmp.eq.s32.totalorder %s30, 1
      %p116 = por %p114, %p115
      %p118 = scmp.ne.s32.totalorder %s103, %s117
      %p119 = scmp.eq.s32.totalorder %s30, 0
      %p120 = por %p118, %p119
      %s122 = sadd.s32 %s121, 1
      %p125 = scmp.eq.s32.totalorder %s24, 1
      %p126 = scmp.ne.s32.totalorder %s121, %s123
      %p127 = scmp.eq.s32.totalorder %s24, 0
      %p128 = por %p126, %p127
      %p129 = scmp.ne.s32.totalorder %s121, %s123
      %p130 = scmp.eq.s32.totalorder %s29, 1
      %p131 = por %p129, %p130
      %p132 = scmp.ne.s32.totalorder %s123, %s124
      %p133 = scmp.eq.s32.totalorder %s29, 0
      %p134 = por %p132, %p133
      %p135 = scmp.ne.s32.totalorder %s123, %s124
      %p136 = scmp.eq.s32.totalorder %s30, 1
      %p137 = por %p135, %p136
      %p139 = scmp.ne.s32.totalorder %s124, %s138
      %p140 = scmp.eq.s32.totalorder %s30, 0
      %p141 = por %p139, %p140
      %s143 = sadd.s32 %s142, 1
      %p146 = scmp.eq.s32.totalorder %s24, 1
      %p147 = scmp.ne.s32.totalorder %s142, %s144
      %p148 = scmp.eq.s32.totalorder %s24, 0
      %p149 = por %p147, %p148
      %p150 = scmp.ne.s32.totalorder %s142, %s144
      %p151 = scmp.eq.s32.totalorder %s29, 1
      %p152 = por %p150, %p151
      %p153 = scmp.ne.s32.totalorder %s144, %s145
      %p154 = scmp.eq.s32.totalorder %s29, 0
      %p155 = por %p153, %p154
      %p156 = scmp.ne.s32.totalorder %s144, %s145
      %p157 = scmp.eq.s32.totalorder %s30, 1
      %p158 = por %p156, %p157
      %p160 = scmp.ne.s32.totalorder %s145, %s159
      %p161 = scmp.eq.s32.totalorder %s30, 0
      %p162 = por %p160, %p161
      %s164 = sadd.s32 %s163, 1
      %p167 = scmp.eq.s32.totalorder %s24, 1
      %p168 = scmp.ne.s32.totalorder %s163, %s165
      %p169 = scmp.eq.s32.totalorder %s24, 0
      %p170 = por %p168, %p169
      %p171 = scmp.ne.s32.totalorder %s163, %s165
      %p172 = scmp.eq.s32.totalorder %s29, 1
      %p173 = por %p171, %p172
      %p174 = scmp.ne.s32.totalorder %s165, %s166
      %p175 = scmp.eq.s32.totalorder %s29, 0
      %p176 = por %p174, %p175
      %p177 = scmp.ne.s32.totalorder %s165, %s166
      %p178 = scmp.eq.s32.totalorder %s30, 1
      %p179 = por %p177, %p178
      %p181 = scmp.ne.s32.totalorder %s166, %s180
      %p182 = scmp.eq.s32.totalorder %s30, 0
      %p183 = por %p181, %p182
      %s185 = sadd.s32 %s184, 1
      %p188 = scmp.eq.s32.totalorder %s24, 1
      %p189 = scmp.ne.s32.totalorder %s184, %s186
      %p190 = scmp.eq.s32.totalorder %s24, 0
      %p191 = por %p189, %p190
      %p192 = scmp.ne.s32.totalorder %s184, %s186
      %p193 = scmp.eq.s32.totalorder %s29, 1
      %p194 = por %p192, %p193
      %p195 = scmp.ne.s32.totalorder %s186, %s187
      %p196 = scmp.eq.s32.totalorder %s29, 0
      %p197 = por %p195, %p196
      %p198 = scmp.ne.s32.totalorder %s186, %s187
      %p199 = scmp.eq.s32.totalorder %s30, 1
      %p200 = por %p198, %p199
      %p202 = scmp.ne.s32.totalorder %s187, %s201
      %p203 = scmp.eq.s32.totalorder %s30, 0
      %p204 = por %p202, %p203
      %s206 = sadd.s32 %s205, 1
      %p209 = scmp.eq.s32.totalorder %s24, 1
      %p210 = scmp.ne.s32.totalorder %s205, %s207
      %p211 = scmp.eq.s32.totalorder %s24, 0
      %p212 = por %p210, %p211
      %p213 = scmp.ne.s32.totalorder %s205, %s207
      %p214 = scmp.eq.s32.totalorder %s29, 1
      %p215 = por %p213, %p214
      %p216 = scmp.ne.s32.totalorder %s207, %s208
      %p217 = scmp.eq.s32.totalorder %s29, 0
      %p218 = por %p216, %p217
      %p219 = scmp.ne.s32.totalorder %s207, %s208
      %p220 = scmp.eq.s32.totalorder %s30, 1
      %p221 = por %p219, %p220
      %p223 = scmp.ne.s32.totalorder %s208, %s222
      %p224 = scmp.eq.s32.totalorder %s30, 0
      %p225 = por %p223, %p224
      %s226 = ssub.s32 %s24, %s31
      %p227 = scmp.eq.s32.totalorder %s226, 0
      %s229 = sadd.s32 %s228, 1
      %s230 = scalar_select %p227, %s228, %s229
      %p233 = pneg %p227
      %p234 = scmp.eq.s32.totalorder %s24, 1
      %p235 = por %p233, %p234
      %p236 = scmp.ne.s32.totalorder %s228, %s231
      %p237 = scmp.eq.s32.totalorder %s24, 0
      %p238 = por %p236, %p237
      %p239 = scmp.ne.s32.totalorder %s228, %s231
      %p240 = scmp.eq.s32.totalorder %s29, 1
      %p241 = por %p239, %p240
      %p242 = scmp.ne.s32.totalorder %s231, %s232
      %p243 = scmp.eq.s32.totalorder %s29, 0
      %p244 = por %p242, %p243
      %p245 = scmp.ne.s32.totalorder %s231, %s232
      %p246 = scmp.eq.s32.totalorder %s30, 1
      %p247 = por %p245, %p246
      %p249 = scmp.ne.s32.totalorder %s232, %s248
      %p250 = scmp.eq.s32.totalorder %s30, 0
      %p251 = por %p249, %p250
      %p252 = scmp.le.s32.totalorder 1, %s24
      %p253 = scmp.lt.s32.totalorder %s24, 3
      %p254 = pnand %p252, %p253
      %p255 = pneg %p254
      // Predicated region
      $region9: #{tpu_custom_call.1} parent=5 // pred_check
        _
      $region10: #{tpu_custom_call.1} parent=5 // pred_check_branch
        %257 = sbr.rel (%p254) target = $region12
      $region11: #{tpu_custom_call.1} parent=5 // pred_region
        %s258 = ssub.s32 %s24, 1
        // Predicated region
        $region13: #{tpu_custom_call.1} parent=11 // pred_check
          %p259 = pneg %p71
        $region14: #{tpu_custom_call.1} parent=11 // pred_check_branch
          %261 = sbr.rel (%p259) target = $region16
        $region15: #{tpu_custom_call.1} parent=11 // pred_region
          %s263 = ssub.s32 2048, 2048
          %264 = vsyncadd [#allocation7], %s263
          %s265 = sshll.u32 [#allocation6], 4
          %s266 = int_to_ptr.vmem [resolvable:$true] %s265
          %271 = dma.hbm_to_vmem [thread:$0]  %s1, 2048, %s266, [#allocation7], 128, 128, 8
        $region16: #{tpu_custom_call.1} parent=11 // pred_fallthru
          _
        // Predicated region
        $region17: #{tpu_custom_call.1} parent=11 // pred_check
          %p272 = pneg %p92
        $region18: #{tpu_custom_call.1} parent=11 // pred_check_branch
          %274 = sbr.rel (%p272) target = $region20
        $region19: #{tpu_custom_call.1} parent=11 // pred_region
          %s276 = ssub.s32 2048, 2048
          %277 = vsyncadd [#allocation7], %s276
          %s278 = sshll.u32 [#allocation8], 4
          %s279 = int_to_ptr.vmem [resolvable:$true] %s278
          %284 = dma.hbm_to_vmem [thread:$0]  %s2, 2048, %s279, [#allocation7], 128, 128, 8
        $region20: #{tpu_custom_call.1} parent=11 // pred_fallthru
          _
        // Predicated region
        $region21: #{tpu_custom_call.1} parent=11 // pred_check
          %p285 = pneg %p113
        $region22: #{tpu_custom_call.1} parent=11 // pred_check_branch
          %287 = sbr.rel (%p285) target = $region24
        $region23: #{tpu_custom_call.1} parent=11 // pred_region
          %s289 = ssub.s32 2048, 2048
          %290 = vsyncadd [#allocation10], %s289
          %s291 = sshll.u32 [#allocation9], 4
          %s292 = int_to_ptr.vmem [resolvable:$true] %s291
          %297 = dma.hbm_to_vmem [thread:$0]  %s3, 2048, %s292, [#allocation10], 128, 128, 8
        $region24: #{tpu_custom_call.1} parent=11 // pred_fallthru
          _
        // Predicated region
        $region25: #{tpu_custom_call.1} parent=11 // pred_check
          %p298 = pneg %p134
        $region26: #{tpu_custom_call.1} parent=11 // pred_check_branch
          %300 = sbr.rel (%p298) target = $region28
        $region27: #{tpu_custom_call.1} parent=11 // pred_region
          _
        $region28: #{tpu_custom_call.1} parent=11 // pred_fallthru
          _
        // Predicated region
        $region29: #{tpu_custom_call.1} parent=11 // pred_check
          %p301 = pneg %p155
        $region30: #{tpu_custom_call.1} parent=11 // pred_check_branch
          %303 = sbr.rel (%p301) target = $region32
        $region31: #{tpu_custom_call.1} parent=11 // pred_region
          %s305 = ssub.s32 2048, 2048
          %306 = vsyncadd [#allocation10], %s305
          %s307 = sshll.u32 [#allocation11], 4
          %s308 = int_to_ptr.vmem [resolvable:$true] %s307
          %313 = dma.hbm_to_vmem [thread:$0]  %s5, 2048, %s308, [#allocation10], 128, 128, 8
        $region32: #{tpu_custom_call.1} parent=11 // pred_fallthru
          _
        // Predicated region
        $region33: #{tpu_custom_call.1} parent=11 // pred_check
          %p314 = pneg %p176
        $region34: #{tpu_custom_call.1} parent=11 // pred_check_branch
          %316 = sbr.rel (%p314) target = $region36
        $region35: #{tpu_custom_call.1} parent=11 // pred_region
          %s318 = ssub.s32 2048, 2048
          %319 = vsyncadd [#allocation13], %s318
          %s320 = sshll.u32 [#allocation12], 4
          %s321 = int_to_ptr.vmem [resolvable:$true] %s320
          %326 = dma.hbm_to_vmem [thread:$0]  %s6, 2048, %s321, [#allocation13], 128, 128, 8
        $region36: #{tpu_custom_call.1} parent=11 // pred_fallthru
          _
        // Predicated region
        $region37: #{tpu_custom_call.1} parent=11 // pred_check
          %p327 = pneg %p197
        $region38: #{tpu_custom_call.1} parent=11 // pred_check_branch
          %329 = sbr.rel (%p327) target = $region40
        $region39: #{tpu_custom_call.1} parent=11 // pred_region
          %s331 = ssub.s32 2048, 2048
          %332 = vsyncadd [#allocation13], %s331
          %s333 = sshll.u32 [#allocation14], 4
          %s334 = int_to_ptr.vmem [resolvable:$true] %s333
          %339 = dma.hbm_to_vmem [thread:$0]  %s7, 2048, %s334, [#allocation13], 128, 128, 8
        $region40: #{tpu_custom_call.1} parent=11 // pred_fallthru
          _
        // Predicated region
        $region41: #{tpu_custom_call.1} parent=11 // pred_check
          %p340 = pneg %p218
        $region42: #{tpu_custom_call.1} parent=11 // pred_check_branch
          %342 = sbr.rel (%p340) target = $region44
        $region43: #{tpu_custom_call.1} parent=11 // pred_region
          _
        $region44: #{tpu_custom_call.1} parent=11 // pred_fallthru
          _
      $region12: #{tpu_custom_call.1} parent=5 // pred_fallthru
        _
      %p343 = scmp.lt.s32.totalorder %s24, 2
      // Predicated region
      $region45: #{tpu_custom_call.1} parent=5 // pred_check
        %p344 = pneg %p343
      $region46: #{tpu_custom_call.1} parent=5 // pred_check_branch
        %346 = sbr.rel (%p344) target = $region48
      $region47: #{tpu_custom_call.1} parent=5 // pred_region
        // Predicated region
        $region49: #{tpu_custom_call.1} parent=47 // pred_check
          %p347 = pneg %p44
        $region50: #{tpu_custom_call.1} parent=47 // pred_check_branch
          %349 = sbr.rel (%p347) target = $region52
        $region51: #{tpu_custom_call.1} parent=47 // pred_region
          %s350 = sand.u32 %s34, 1
          %s351 = scalar_lea.sflag [#allocation4], %s350
          %s352 = sand.u32 %s34, 1
          %s353 = smul.addr %s352, 8
          %s354 = scalar_lea.vmem [#allocation3], %s353
          %s356 = ssub.s32 128, 128
          %357 = vsyncadd %s351, %s356
          %s358 = smul.addr %s24, 128
          %s359 = scalar_lea.hbm %s0, %s358
          %s361 = sshll.u32 %s354, 4
          %s362 = int_to_ptr.vmem [resolvable:$true] %s361
          %364 = dma.hbm_to_vmem [thread:$0]  %s359, 128, %s362, %s351
        $region52: #{tpu_custom_call.1} parent=47 // pred_fallthru
          _
      $region48: #{tpu_custom_call.1} parent=5 // pred_fallthru
        _
      %p365 = scmp.le.s32.totalorder 1, %s24
      %p366 = scmp.lt.s32.totalorder %s24, 3
      %p367 = pnand %p365, %p366
      %p368 = pneg %p367
      // Predicated region
      $region53: #{tpu_custom_call.1} parent=5 // pred_check
        _
      $region54: #{tpu_custom_call.1} parent=5 // pred_check_branch
        %370 = sbr.rel (%p367) target = $region56
      $region55: #{tpu_custom_call.1} parent=5 // pred_region
        %s371 = ssub.s32 %s24, 1
        %s372 = sand.u32 %s37, 1
        %s373 = scalar_lea.sflag [#allocation4], %s372
        %s374 = sand.u32 %s37, 1
        %s375 = smul.addr %s374, 8
        %s376 = scalar_lea.vmem [#allocation3], %s375
        // Predicated region
        $region57: #{tpu_custom_call.1} parent=55 // pred_check
          %p377 = pneg %p50
        $region58: #{tpu_custom_call.1} parent=55 // pred_check_branch
          %379 = sbr.rel (%p377) target = $region60
        $region59: #{tpu_custom_call.1} parent=55 // pred_region
          %380 = dma.done %s373, 128
        $region60: #{tpu_custom_call.1} parent=55 // pred_fallthru
          _
        // Predicated region
        $region61: #{tpu_custom_call.1} parent=55 // pred_check
          %p381 = pneg %p71
        $region62: #{tpu_custom_call.1} parent=55 // pred_check_branch
          %383 = sbr.rel (%p381) target = $region64
        $region63: #{tpu_custom_call.1} parent=55 // pred_region
          %384 = dma.done [#allocation7], 2048
        $region64: #{tpu_custom_call.1} parent=55 // pred_fallthru
          _
        // Predicated region
        $region65: #{tpu_custom_call.1} parent=55 // pred_check
          %p385 = pneg %p92
        $region66: #{tpu_custom_call.1} parent=55 // pred_check_branch
          %387 = sbr.rel (%p385) target = $region68
        $region67: #{tpu_custom_call.1} parent=55 // pred_region
          %388 = dma.done [#allocation7], 2048
        $region68: #{tpu_custom_call.1} parent=55 // pred_fallthru
          _
        // Predicated region
        $region69: #{tpu_custom_call.1} parent=55 // pred_check
          %p389 = pneg %p113
        $region70: #{tpu_custom_call.1} parent=55 // pred_check_branch
          %391 = sbr.rel (%p389) target = $region72
        $region71: #{tpu_custom_call.1} parent=55 // pred_region
          %392 = dma.done [#allocation10], 2048
        $region72: #{tpu_custom_call.1} parent=55 // pred_fallthru
          _
        // Predicated region
        $region73: #{tpu_custom_call.1} parent=55 // pred_check
          %p393 = pneg %p155
        $region74: #{tpu_custom_call.1} parent=55 // pred_check_branch
          %395 = sbr.rel (%p393) target = $region76
        $region75: #{tpu_custom_call.1} parent=55 // pred_region
          %396 = dma.done [#allocation10], 2048
        $region76: #{tpu_custom_call.1} parent=55 // pred_fallthru
          _
        // Predicated region
        $region77: #{tpu_custom_call.1} parent=55 // pred_check
          %p397 = pneg %p176
        $region78: #{tpu_custom_call.1} parent=55 // pred_check_branch
          %399 = sbr.rel (%p397) target = $region80
        $region79: #{tpu_custom_call.1} parent=55 // pred_region
          %400 = dma.done [#allocation13], 2048
        $region80: #{tpu_custom_call.1} parent=55 // pred_fallthru
          _
        // Predicated region
        $region81: #{tpu_custom_call.1} parent=55 // pred_check
          %p401 = pneg %p197
        $region82: #{tpu_custom_call.1} parent=55 // pred_check_branch
          %403 = sbr.rel (%p401) target = $region84
        $region83: #{tpu_custom_call.1} parent=55 // pred_region
          %404 = dma.done [#allocation13], 2048
        $region84: #{tpu_custom_call.1} parent=55 // pred_fallthru
          _
        %s405 = sand.u32 %s37, 1
        %s406 = scalar_lea.sflag [#allocation4], %s405
        %s407 = sand.u32 %s37, 1
        %s408 = smul.addr %s407, 8
        %s409 = scalar_lea.vmem [#allocation3], %s408
        %p410 = pneg %p50
        %p411 = pneg %p47
        %p412 = pneg %p71
        %p413 = pneg %p68
        %p414 = pneg %p92
        %p415 = pneg %p89
        %p416 = pneg %p113
        %p417 = pneg %p110
        %p418 = pneg %p134
        %p419 = pneg %p131
        %p420 = pneg %p155
        %p421 = pneg %p152
        %p422 = pneg %p176
        %p423 = pneg %p173
        %p424 = pneg %p197
        %p425 = pneg %p194
        %p426 = pneg %p218
        %p427 = pneg %p215
        %p428 = pneg %p244
        %p429 = pneg %p241
        %s430 = sand.u32 %s231, 1
        %s431 = scalar_lea.sflag [#allocation5], %s430
        %s432 = sand.u32 %s231, 1
        %s433 = smul.addr %s432, 8
        %s434 = scalar_lea.vmem [#allocation15], %s433
        %435 = vst [vmem:[#allocation2] sm:$0x1] 0.0
        %436 = vst [vmem:[#allocation2 + $0x9] sm:$0x1] 0.0
        %v437 = vld [vmem:[%s376] sm:$0xff]
        %438 = vst [vmem:[#allocation2 + $0x1] sm:$0xff] %v437
        %v439 = vld [vmem:[#allocation2] sm:$0xff]
        %v440 = vld [vmem:[#allocation2 + $0x1] sm:$0xff]
        %v441 = vld [vmem:[#allocation2 + $0x2] sm:$0xff]
        %v442 = vld [vmem:[#allocation8] sm:$0xff]
        %v443 = vld [vmem:[#allocation8 + $0x8] sm:$0xff]
        %v444 = vld [vmem:[#allocation8 + $0x10] sm:$0xff]
        %v445 = vld [vmem:[#allocation8 + $0x18] sm:$0xff]
        %v446 = vld [vmem:[#allocation8 + $0x20] sm:$0xff]
        %v447 = vld [vmem:[#allocation8 + $0x28] sm:$0xff]
        %v448 = vld [vmem:[#allocation8 + $0x30] sm:$0xff]
        %v449 = vld [vmem:[#allocation8 + $0x38] sm:$0xff]
        %v450 = vld [vmem:[#allocation8 + $0x40] sm:$0xff]
        %v451 = vld [vmem:[#allocation8 + $0x48] sm:$0xff]
        %v452 = vld [vmem:[#allocation8 + $0x50] sm:$0xff]
        %v453 = vld [vmem:[#allocation8 + $0x58] sm:$0xff]
        %v454 = vld [vmem:[#allocation8 + $0x60] sm:$0xff]
        %v455 = vld [vmem:[#allocation8 + $0x68] sm:$0xff]
        %v456 = vld [vmem:[#allocation8 + $0x70] sm:$0xff]
        %v457 = vld [vmem:[#allocation8 + $0x78] sm:$0xff]
        %v458 = vld [vmem:[#allocation6] sm:$0xff]
        %v459 = vld [vmem:[#allocation6 + $0x8] sm:$0xff]
        %v460 = vld [vmem:[#allocation6 + $0x10] sm:$0xff]
        %v461 = vld [vmem:[#allocation6 + $0x18] sm:$0xff]
        %v462 = vld [vmem:[#allocation6 + $0x20] sm:$0xff]
        %v463 = vld [vmem:[#allocation6 + $0x28] sm:$0xff]
        %v464 = vld [vmem:[#allocation6 + $0x30] sm:$0xff]
        %v465 = vld [vmem:[#allocation6 + $0x38] sm:$0xff]
        %v466 = vld [vmem:[#allocation6 + $0x40] sm:$0xff]
        %v467 = vld [vmem:[#allocation6 + $0x48] sm:$0xff]
        %v468 = vld [vmem:[#allocation6 + $0x50] sm:$0xff]
        %v469 = vld [vmem:[#allocation6 + $0x58] sm:$0xff]
        %v470 = vld [vmem:[#allocation6 + $0x60] sm:$0xff]
        %v471 = vld [vmem:[#allocation6 + $0x68] sm:$0xff]
        %v472 = vld [vmem:[#allocation6 + $0x70] sm:$0xff]
        %v473 = vld [vmem:[#allocation6 + $0x78] sm:$0xff]
        %474 = vmatprep.subr.mxu0 0.0
        %475 = vmatpush1.msra.mxu0 %v473
        %476 = vmatprep.subr.mxu0 0.0
        %477 = vmatpush1.msra.mxu0 %v472
        %478 = vmatprep.subr.mxu0 0.0
        %479 = vmatpush1.msra.mxu0 %v471
        %480 = vmatprep.subr.mxu0 0.0
        %481 = vmatpush1.msra.mxu0 %v470
        %482 = vmatprep.subr.mxu0 0.0
        %483 = vmatpush1.msra.mxu0 %v469
        %484 = vmatprep.subr.mxu0 0.0
        %485 = vmatpush1.msra.mxu0 %v468
        %486 = vmatprep.subr.mxu0 0.0
        %487 = vmatpush1.msra.mxu0 %v467
        %488 = vmatprep.subr.mxu0 0.0
        %489 = vmatpush1.msra.mxu0 %v466
        %490 = vmatprep.subr.mxu0 0.0
        %491 = vmatpush1.msra.mxu0 %v465
        %492 = vmatprep.subr.mxu0 0.0
        %493 = vmatpush1.msra.mxu0 %v464
        %494 = vmatprep.subr.mxu0 0.0
        %495 = vmatpush1.msra.mxu0 %v463
        %496 = vmatprep.subr.mxu0 0.0
        %497 = vmatpush1.msra.mxu0 %v462
        %498 = vmatprep.subr.mxu0 0.0
        %499 = vmatpush1.msra.mxu0 %v461
        %500 = vmatprep.subr.mxu0 0.0
        %501 = vmatpush1.msra.mxu0 %v460
        %502 = vmatprep.subr.mxu0 0.0
        %503 = vmatpush1.msra.mxu0 %v459
        %504 = vmatprep.subr.mxu0 0.0
        %505 = vmatpush1.msra.mxu0 %v458
        %506 = vmatprep.subr.mxu0 0.0
        %507 = vmatpush2.msra.mxu0 0.0
        %508 = vmatprep.subr.mxu0 0.0
        %509 = vmatpush2.msra.mxu0 0.0
        %510 = vmatprep.subr.mxu0 0.0
        %511 = vmatpush2.msra.mxu0 0.0
        %512 = vmatprep.subr.mxu0 0.0
        %513 = vmatpush2.msra.mxu0 0.0
        %514 = vmatprep.subr.mxu0 0.0
        %515 = vmatpush2.msra.mxu0 0.0
        %516 = vmatprep.subr.mxu0 0.0
        %517 = vmatpush2.msra.mxu0 0.0
        %518 = vmatprep.subr.mxu0 0.0
        %519 = vmatpush2.msra.mxu0 0.0
        %520 = vmatprep.subr.mxu0 0.0
        %521 = vmatpush2.msra.mxu0 0.0
        %522 = vmatprep.subr.mxu0 0.0
        %523 = vmatpush2.msra.mxu0 0.0
        %524 = vmatprep.subr.mxu0 0.0
        %525 = vmatpush2.msra.mxu0 0.0
        %526 = vmatprep.subr.mxu0 0.0
        %527 = vmatpush2.msra.mxu0 0.0
        %528 = vmatprep.subr.mxu0 0.0
        %529 = vmatpush2.msra.mxu0 0.0
        %530 = vmatprep.subr.mxu0 0.0
        %531 = vmatpush2.msra.mxu0 0.0
        %532 = vmatprep.subr.mxu0 0.0
        %533 = vmatpush2.msra.mxu0 0.0
        %534 = vmatprep.subr.mxu0 0.0
        %535 = vmatpush2.msra.mxu0 0.0
        %536 = vmatprep.subr.mxu0 0.0
        %537 = vmatpush2.msra.mxu0 0.0
        %538 = vmatprep.mubr.f32.mxu0 0.0
        %539 = vmatmul.mubr.f32.gmra.mxu0 %v439
        %v540 = vpop.f32.mrf.mxu0
        %v541 = vadd.f32 0.0, %v540
        %v542 = vpop.f32.mrf.mxu0
        %543 = vdwg.mxu0
        %544 = vmatprep.subr.mxu0 0.0
        %545 = vmatpush1.msra.mxu0 %v457
        %546 = vmatprep.subr.mxu0 0.0
        %547 = vmatpush1.msra.mxu0 %v456
        %548 = vmatprep.subr.mxu0 0.0
        %549 = vmatpush1.msra.mxu0 %v455
        %550 = vmatprep.subr.mxu0 0.0
        %551 = vmatpush1.msra.mxu0 %v454
        %552 = vmatprep.subr.mxu0 0.0
        %553 = vmatpush1.msra.mxu0 %v453
        %554 = vmatprep.subr.mxu0 0.0
        %555 = vmatpush1.msra.mxu0 %v452
        %556 = vmatprep.subr.mxu0 0.0
        %557 = vmatpush1.msra.mxu0 %v451
        %558 = vmatprep.subr.mxu0 0.0
        %559 = vmatpush1.msra.mxu0 %v450
        %560 = vmatprep.subr.mxu0 0.0
        %561 = vmatpush1.msra.mxu0 %v449
        %562 = vmatprep.subr.mxu0 0.0
        %563 = vmatpush1.msra.mxu0 %v448
        %564 = vmatprep.subr.mxu0 0.0
        %565 = vmatpush1.msra.mxu0 %v447
        %566 = vmatprep.subr.mxu0 0.0
        %567 = vmatpush1.msra.mxu0 %v446
        %568 = vmatprep.subr.mxu0 0.0
        %569 = vmatpush1.msra.mxu0 %v445
        %570 = vmatprep.subr.mxu0 0.0
        %571 = vmatpush1.msra.mxu0 %v444
        %572 = vmatprep.subr.mxu0 0.0
        %573 = vmatpush1.msra.mxu0 %v443
        %574 = vmatprep.subr.mxu0 0.0
        %575 = vmatpush1.msra.mxu0 %v442
        %576 = vmatprep.subr.mxu0 0.0
        %577 = vmatpush2.msra.mxu0 0.0
        %578 = vmatprep.subr.mxu0 0.0
        %579 = vmatpush2.msra.mxu0 0.0
        %580 = vmatprep.subr.mxu0 0.0
        %581 = vmatpush2.msra.mxu0 0.0
        %582 = vmatprep.subr.mxu0 0.0
        %583 = vmatpush2.msra.mxu0 0.0
        %584 = vmatprep.subr.mxu0 0.0
        %585 = vmatpush2.msra.mxu0 0.0
        %586 = vmatprep.subr.mxu0 0.0
        %587 = vmatpush2.msra.mxu0 0.0
        %588 = vmatprep.subr.mxu0 0.0
        %589 = vmatpush2.msra.mxu0 0.0
        %590 = vmatprep.subr.mxu0 0.0
        %591 = vmatpush2.msra.mxu0 0.0
        %592 = vmatprep.subr.mxu0 0.0
        %593 = vmatpush2.msra.mxu0 0.0
        %594 = vmatprep.subr.mxu0 0.0
        %595 = vmatpush2.msra.mxu0 0.0
        %596 = vmatprep.subr.mxu0 0.0
        %597 = vmatpush2.msra.mxu0 0.0
        %598 = vmatprep.subr.mxu0 0.0
        %599 = vmatpush2.msra.mxu0 0.0
        %600 = vmatprep.subr.mxu0 0.0
        %601 = vmatpush2.msra.mxu0 0.0
        %602 = vmatprep.subr.mxu0 0.0
        %603 = vmatpush2.msra.mxu0 0.0
        %604 = vmatprep.subr.mxu0 0.0
        %605 = vmatpush2.msra.mxu0 0.0
        %606 = vmatprep.subr.mxu0 0.0
        %607 = vmatpush2.msra.mxu0 0.0
        %608 = vmatprep.mubr.f32.mxu0 0.0
        %609 = vmatmul.mubr.f32.gmra.mxu0 %v440
        %v610 = vpop.f32.mrf.mxu0
        %v611 = vadd.f32 %v541, %v610
        %v612 = vpop.f32.mrf.mxu0
        %613 = vdwg.mxu0
        %v614 = vld [vmem:[#allocation9] sm:$0xff]
        %v615 = vld [vmem:[#allocation9 + $0x8] sm:$0xff]
        %v616 = vld [vmem:[#allocation9 + $0x10] sm:$0xff]
        %v617 = vld [vmem:[#allocation9 + $0x18] sm:$0xff]
        %v618 = vld [vmem:[#allocation9 + $0x20] sm:$0xff]
        %v619 = vld [vmem:[#allocation9 + $0x28] sm:$0xff]
        %v620 = vld [vmem:[#allocation9 + $0x30] sm:$0xff]
        %v621 = vld [vmem:[#allocation9 + $0x38] sm:$0xff]
        %v622 = vld [vmem:[#allocation9 + $0x40] sm:$0xff]
        %v623 = vld [vmem:[#allocation9 + $0x48] sm:$0xff]
        %v624 = vld [vmem:[#allocation9 + $0x50] sm:$0xff]
        %v625 = vld [vmem:[#allocation9 + $0x58] sm:$0xff]
        %v626 = vld [vmem:[#allocation9 + $0x60] sm:$0xff]
        %v627 = vld [vmem:[#allocation9 + $0x68] sm:$0xff]
        %v628 = vld [vmem:[#allocation9 + $0x70] sm:$0xff]
        %v629 = vld [vmem:[#allocation9 + $0x78] sm:$0xff]
        %630 = vmatprep.subr.mxu0 0.0
        %631 = vmatpush1.msra.mxu0 %v629
        %632 = vmatprep.subr.mxu0 0.0
        %633 = vmatpush1.msra.mxu0 %v628
        %634 = vmatprep.subr.mxu0 0.0
        %635 = vmatpush1.msra.mxu0 %v627
        %636 = vmatprep.subr.mxu0 0.0
        %637 = vmatpush1.msra.mxu0 %v626
        %638 = vmatprep.subr.mxu0 0.0
        %639 = vmatpush1.msra.mxu0 %v625
        %640 = vmatprep.subr.mxu0 0.0
        %641 = vmatpush1.msra.mxu0 %v624
        %642 = vmatprep.subr.mxu0 0.0
        %643 = vmatpush1.msra.mxu0 %v623
        %644 = vmatprep.subr.mxu0 0.0
        %645 = vmatpush1.msra.mxu0 %v622
        %646 = vmatprep.subr.mxu0 0.0
        %647 = vmatpush1.msra.mxu0 %v621
        %648 = vmatprep.subr.mxu0 0.0
        %649 = vmatpush1.msra.mxu0 %v620
        %650 = vmatprep.subr.mxu0 0.0
        %651 = vmatpush1.msra.mxu0 %v619
        %652 = vmatprep.subr.mxu0 0.0
        %653 = vmatpush1.msra.mxu0 %v618
        %654 = vmatprep.subr.mxu0 0.0
        %655 = vmatpush1.msra.mxu0 %v617
        %656 = vmatprep.subr.mxu0 0.0
        %657 = vmatpush1.msra.mxu0 %v616
        %658 = vmatprep.subr.mxu0 0.0
        %659 = vmatpush1.msra.mxu0 %v615
        %660 = vmatprep.subr.mxu0 0.0
        %661 = vmatpush1.msra.mxu0 %v614
        %662 = vmatprep.subr.mxu0 0.0
        %663 = vmatpush2.msra.mxu0 0.0
        %664 = vmatprep.subr.mxu0 0.0
        %665 = vmatpush2.msra.mxu0 0.0
        %666 = vmatprep.subr.mxu0 0.0
        %667 = vmatpush2.msra.mxu0 0.0
        %668 = vmatprep.subr.mxu0 0.0
        %669 = vmatpush2.msra.mxu0 0.0
        %670 = vmatprep.subr.mxu0 0.0
        %671 = vmatpush2.msra.mxu0 0.0
        %672 = vmatprep.subr.mxu0 0.0
        %673 = vmatpush2.msra.mxu0 0.0
        %674 = vmatprep.subr.mxu0 0.0
        %675 = vmatpush2.msra.mxu0 0.0
        %676 = vmatprep.subr.mxu0 0.0
        %677 = vmatpush2.msra.mxu0 0.0
        %678 = vmatprep.subr.mxu0 0.0
        %679 = vmatpush2.msra.mxu0 0.0
        %680 = vmatprep.subr.mxu0 0.0
        %681 = vmatpush2.msra.mxu0 0.0
        %682 = vmatprep.subr.mxu0 0.0
        %683 = vmatpush2.msra.mxu0 0.0
        %684 = vmatprep.subr.mxu0 0.0
        %685 = vmatpush2.msra.mxu0 0.0
        %686 = vmatprep.subr.mxu0 0.0
        %687 = vmatpush2.msra.mxu0 0.0
        %688 = vmatprep.subr.mxu0 0.0
        %689 = vmatpush2.msra.mxu0 0.0
        %690 = vmatprep.subr.mxu0 0.0
        %691 = vmatpush2.msra.mxu0 0.0
        %692 = vmatprep.subr.mxu0 0.0
        %693 = vmatpush2.msra.mxu0 0.0
        %694 = vmatprep.mubr.f32.mxu0 0.0
        %695 = vmatmul.mubr.f32.gmra.mxu0 %v441
        %v696 = vpop.f32.mrf.mxu0
        %v697 = vadd.f32 0.0, %v696
        %v698 = vpop.f32.mrf.mxu0
        %699 = vdwg.mxu0
        %v700 = vadd.f32 %v611, %v697
        %v701 = vld [vmem:[%s4] sm:$0x1]
        %v703 = vlaneseq
        %v704 = vshrl.u32 %v703, 7
        %v705 = vsub.s32 0, %v704
        %v706 = vrot.slane %v701, %v705
        %v708 = vadd.f32 %v700, %v706
        %v709 = vmax.f32 %v708, 0.0
        %710 = vst [vmem:[#allocation2 + $0x1] sm:$0xff] %v709
        %v711 = vld [vmem:[#allocation2] sm:$0xff]
        %v712 = vld [vmem:[#allocation2 + $0x1] sm:$0xff]
        %v713 = vld [vmem:[#allocation2 + $0x2] sm:$0xff]
        %v714 = vld [vmem:[#allocation12] sm:$0xff]
        %v715 = vld [vmem:[#allocation12 + $0x8] sm:$0xff]
        %v716 = vld [vmem:[#allocation12 + $0x10] sm:$0xff]
        %v717 = vld [vmem:[#allocation12 + $0x18] sm:$0xff]
        %v718 = vld [vmem:[#allocation12 + $0x20] sm:$0xff]
        %v719 = vld [vmem:[#allocation12 + $0x28] sm:$0xff]
        %v720 = vld [vmem:[#allocation12 + $0x30] sm:$0xff]
        %v721 = vld [vmem:[#allocation12 + $0x38] sm:$0xff]
        %v722 = vld [vmem:[#allocation12 + $0x40] sm:$0xff]
        %v723 = vld [vmem:[#allocation12 + $0x48] sm:$0xff]
        %v724 = vld [vmem:[#allocation12 + $0x50] sm:$0xff]
        %v725 = vld [vmem:[#allocation12 + $0x58] sm:$0xff]
        %v726 = vld [vmem:[#allocation12 + $0x60] sm:$0xff]
        %v727 = vld [vmem:[#allocation12 + $0x68] sm:$0xff]
        %v728 = vld [vmem:[#allocation12 + $0x70] sm:$0xff]
        %v729 = vld [vmem:[#allocation12 + $0x78] sm:$0xff]
        %v730 = vld [vmem:[#allocation11] sm:$0xff]
        %v731 = vld [vmem:[#allocation11 + $0x8] sm:$0xff]
        %v732 = vld [vmem:[#allocation11 + $0x10] sm:$0xff]
        %v733 = vld [vmem:[#allocation11 + $0x18] sm:$0xff]
        %v734 = vld [vmem:[#allocation11 + $0x20] sm:$0xff]
        %v735 = vld [vmem:[#allocation11 + $0x28] sm:$0xff]
        %v736 = vld [vmem:[#allocation11 + $0x30] sm:$0xff]
        %v737 = vld [vmem:[#allocation11 + $0x38] sm:$0xff]
        %v738 = vld [vmem:[#allocation11 + $0x40] sm:$0xff]
        %v739 = vld [vmem:[#allocation11 + $0x48] sm:$0xff]
        %v740 = vld [vmem:[#allocation11 + $0x50] sm:$0xff]
        %v741 = vld [vmem:[#allocation11 + $0x58] sm:$0xff]
        %v742 = vld [vmem:[#allocation11 + $0x60] sm:$0xff]
        %v743 = vld [vmem:[#allocation11 + $0x68] sm:$0xff]
        %v744 = vld [vmem:[#allocation11 + $0x70] sm:$0xff]
        %v745 = vld [vmem:[#allocation11 + $0x78] sm:$0xff]
        %746 = vmatprep.subr.mxu0 0.0
        %747 = vmatpush1.msra.mxu0 %v745
        %748 = vmatprep.subr.mxu0 0.0
        %749 = vmatpush1.msra.mxu0 %v744
        %750 = vmatprep.subr.mxu0 0.0
        %751 = vmatpush1.msra.mxu0 %v743
        %752 = vmatprep.subr.mxu0 0.0
        %753 = vmatpush1.msra.mxu0 %v742
        %754 = vmatprep.subr.mxu0 0.0
        %755 = vmatpush1.msra.mxu0 %v741
        %756 = vmatprep.subr.mxu0 0.0
        %757 = vmatpush1.msra.mxu0 %v740
        %758 = vmatprep.subr.mxu0 0.0
        %759 = vmatpush1.msra.mxu0 %v739
        %760 = vmatprep.subr.mxu0 0.0
        %761 = vmatpush1.msra.mxu0 %v738
        %762 = vmatprep.subr.mxu0 0.0
        %763 = vmatpush1.msra.mxu0 %v737
        %764 = vmatprep.subr.mxu0 0.0
        %765 = vmatpush1.msra.mxu0 %v736
        %766 = vmatprep.subr.mxu0 0.0
        %767 = vmatpush1.msra.mxu0 %v735
        %768 = vmatprep.subr.mxu0 0.0
        %769 = vmatpush1.msra.mxu0 %v734
        %770 = vmatprep.subr.mxu0 0.0
        %771 = vmatpush1.msra.mxu0 %v733
        %772 = vmatprep.subr.mxu0 0.0
        %773 = vmatpush1.msra.mxu0 %v732
        %774 = vmatprep.subr.mxu0 0.0
        %775 = vmatpush1.msra.mxu0 %v731
        %776 = vmatprep.subr.mxu0 0.0
        %777 = vmatpush1.msra.mxu0 %v730
        %778 = vmatprep.subr.mxu0 0.0
        %779 = vmatpush2.msra.mxu0 0.0
        %780 = vmatprep.subr.mxu0 0.0
        %781 = vmatpush2.msra.mxu0 0.0
        %782 = vmatprep.subr.mxu0 0.0
        %783 = vmatpush2.msra.mxu0 0.0
        %784 = vmatprep.subr.mxu0 0.0
        %785 = vmatpush2.msra.mxu0 0.0
        %786 = vmatprep.subr.mxu0 0.0
        %787 = vmatpush2.msra.mxu0 0.0
        %788 = vmatprep.subr.mxu0 0.0
        %789 = vmatpush2.msra.mxu0 0.0
        %790 = vmatprep.subr.mxu0 0.0
        %791 = vmatpush2.msra.mxu0 0.0
        %792 = vmatprep.subr.mxu0 0.0
        %793 = vmatpush2.msra.mxu0 0.0
        %794 = vmatprep.subr.mxu0 0.0
        %795 = vmatpush2.msra.mxu0 0.0
        %796 = vmatprep.subr.mxu0 0.0
        %797 = vmatpush2.msra.mxu0 0.0
        %798 = vmatprep.subr.mxu0 0.0
        %799 = vmatpush2.msra.mxu0 0.0
        %800 = vmatprep.subr.mxu0 0.0
        %801 = vmatpush2.msra.mxu0 0.0
        %802 = vmatprep.subr.mxu0 0.0
        %803 = vmatpush2.msra.mxu0 0.0
        %804 = vmatprep.subr.mxu0 0.0
        %805 = vmatpush2.msra.mxu0 0.0
        %806 = vmatprep.subr.mxu0 0.0
        %807 = vmatpush2.msra.mxu0 0.0
        %808 = vmatprep.subr.mxu0 0.0
        %809 = vmatpush2.msra.mxu0 0.0
        %810 = vmatprep.mubr.f32.mxu0 0.0
        %811 = vmatmul.mubr.f32.gmra.mxu0 %v711
        %v812 = vpop.f32.mrf.mxu0
        %v813 = vadd.f32 0.0, %v812
        %v814 = vpop.f32.mrf.mxu0
        %815 = vdwg.mxu0
        %816 = vmatprep.subr.mxu0 0.0
        %817 = vmatpush1.msra.mxu0 %v729
        %818 = vmatprep.subr.mxu0 0.0
        %819 = vmatpush1.msra.mxu0 %v728
        %820 = vmatprep.subr.mxu0 0.0
        %821 = vmatpush1.msra.mxu0 %v727
        %822 = vmatprep.subr.mxu0 0.0
        %823 = vmatpush1.msra.mxu0 %v726
        %824 = vmatprep.subr.mxu0 0.0
        %825 = vmatpush1.msra.mxu0 %v725
        %826 = vmatprep.subr.mxu0 0.0
        %827 = vmatpush1.msra.mxu0 %v724
        %828 = vmatprep.subr.mxu0 0.0
        %829 = vmatpush1.msra.mxu0 %v723
        %830 = vmatprep.subr.mxu0 0.0
        %831 = vmatpush1.msra.mxu0 %v722
        %832 = vmatprep.subr.mxu0 0.0
        %833 = vmatpush1.msra.mxu0 %v721
        %834 = vmatprep.subr.mxu0 0.0
        %835 = vmatpush1.msra.mxu0 %v720
        %836 = vmatprep.subr.mxu0 0.0
        %837 = vmatpush1.msra.mxu0 %v719
        %838 = vmatprep.subr.mxu0 0.0
        %839 = vmatpush1.msra.mxu0 %v718
        %840 = vmatprep.subr.mxu0 0.0
        %841 = vmatpush1.msra.mxu0 %v717
        %842 = vmatprep.subr.mxu0 0.0
        %843 = vmatpush1.msra.mxu0 %v716
        %844 = vmatprep.subr.mxu0 0.0
        %845 = vmatpush1.msra.mxu0 %v715
        %846 = vmatprep.subr.mxu0 0.0
        %847 = vmatpush1.msra.mxu0 %v714
        %848 = vmatprep.subr.mxu0 0.0
        %849 = vmatpush2.msra.mxu0 0.0
        %850 = vmatprep.subr.mxu0 0.0
        %851 = vmatpush2.msra.mxu0 0.0
        %852 = vmatprep.subr.mxu0 0.0
        %853 = vmatpush2.msra.mxu0 0.0
        %854 = vmatprep.subr.mxu0 0.0
        %855 = vmatpush2.msra.mxu0 0.0
        %856 = vmatprep.subr.mxu0 0.0
        %857 = vmatpush2.msra.mxu0 0.0
        %858 = vmatprep.subr.mxu0 0.0
        %859 = vmatpush2.msra.mxu0 0.0
        %860 = vmatprep.subr.mxu0 0.0
        %861 = vmatpush2.msra.mxu0 0.0
        %862 = vmatprep.subr.mxu0 0.0
        %863 = vmatpush2.msra.mxu0 0.0
        %864 = vmatprep.subr.mxu0 0.0
        %865 = vmatpush2.msra.mxu0 0.0
        %866 = vmatprep.subr.mxu0 0.0
        %867 = vmatpush2.msra.mxu0 0.0
        %868 = vmatprep.subr.mxu0 0.0
        %869 = vmatpush2.msra.mxu0 0.0
        %870 = vmatprep.subr.mxu0 0.0
        %871 = vmatpush2.msra.mxu0 0.0
        %872 = vmatprep.subr.mxu0 0.0
        %873 = vmatpush2.msra.mxu0 0.0
        %874 = vmatprep.subr.mxu0 0.0
        %875 = vmatpush2.msra.mxu0 0.0
        %876 = vmatprep.subr.mxu0 0.0
        %877 = vmatpush2.msra.mxu0 0.0
        %878 = vmatprep.subr.mxu0 0.0
        %879 = vmatpush2.msra.mxu0 0.0
        %880 = vmatprep.mubr.f32.mxu0 0.0
        %881 = vmatmul.mubr.f32.gmra.mxu0 %v712
        %v882 = vpop.f32.mrf.mxu0
        %v883 = vadd.f32 %v813, %v882
        %v884 = vpop.f32.mrf.mxu0
        %885 = vdwg.mxu0
        %v886 = vld [vmem:[#allocation14] sm:$0xff]
        %v887 = vld [vmem:[#allocation14 + $0x8] sm:$0xff]
        %v888 = vld [vmem:[#allocation14 + $0x10] sm:$0xff]
        %v889 = vld [vmem:[#allocation14 + $0x18] sm:$0xff]
        %v890 = vld [vmem:[#allocation14 + $0x20] sm:$0xff]
        %v891 = vld [vmem:[#allocation14 + $0x28] sm:$0xff]
        %v892 = vld [vmem:[#allocation14 + $0x30] sm:$0xff]
        %v893 = vld [vmem:[#allocation14 + $0x38] sm:$0xff]
        %v894 = vld [vmem:[#allocation14 + $0x40] sm:$0xff]
        %v895 = vld [vmem:[#allocation14 + $0x48] sm:$0xff]
        %v896 = vld [vmem:[#allocation14 + $0x50] sm:$0xff]
        %v897 = vld [vmem:[#allocation14 + $0x58] sm:$0xff]
        %v898 = vld [vmem:[#allocation14 + $0x60] sm:$0xff]
        %v899 = vld [vmem:[#allocation14 + $0x68] sm:$0xff]
        %v900 = vld [vmem:[#allocation14 + $0x70] sm:$0xff]
        %v901 = vld [vmem:[#allocation14 + $0x78] sm:$0xff]
        %902 = vmatprep.subr.mxu0 0.0
        %903 = vmatpush1.msra.mxu0 %v901
        %904 = vmatprep.subr.mxu0 0.0
        %905 = vmatpush1.msra.mxu0 %v900
        %906 = vmatprep.subr.mxu0 0.0
        %907 = vmatpush1.msra.mxu0 %v899
        %908 = vmatprep.subr.mxu0 0.0
        %909 = vmatpush1.msra.mxu0 %v898
        %910 = vmatprep.subr.mxu0 0.0
        %911 = vmatpush1.msra.mxu0 %v897
        %912 = vmatprep.subr.mxu0 0.0
        %913 = vmatpush1.msra.mxu0 %v896
        %914 = vmatprep.subr.mxu0 0.0
        %915 = vmatpush1.msra.mxu0 %v895
        %916 = vmatprep.subr.mxu0 0.0
        %917 = vmatpush1.msra.mxu0 %v894
        %918 = vmatprep.subr.mxu0 0.0
        %919 = vmatpush1.msra.mxu0 %v893
        %920 = vmatprep.subr.mxu0 0.0
        %921 = vmatpush1.msra.mxu0 %v892
        %922 = vmatprep.subr.mxu0 0.0
        %923 = vmatpush1.msra.mxu0 %v891
        %924 = vmatprep.subr.mxu0 0.0
        %925 = vmatpush1.msra.mxu0 %v890
        %926 = vmatprep.subr.mxu0 0.0
        %927 = vmatpush1.msra.mxu0 %v889
        %928 = vmatprep.subr.mxu0 0.0
        %929 = vmatpush1.msra.mxu0 %v888
        %930 = vmatprep.subr.mxu0 0.0
        %931 = vmatpush1.msra.mxu0 %v887
        %932 = vmatprep.subr.mxu0 0.0
        %933 = vmatpush1.msra.mxu0 %v886
        %934 = vmatprep.subr.mxu0 0.0
        %935 = vmatpush2.msra.mxu0 0.0
        %936 = vmatprep.subr.mxu0 0.0
        %937 = vmatpush2.msra.mxu0 0.0
        %938 = vmatprep.subr.mxu0 0.0
        %939 = vmatpush2.msra.mxu0 0.0
        %940 = vmatprep.subr.mxu0 0.0
        %941 = vmatpush2.msra.mxu0 0.0
        %942 = vmatprep.subr.mxu0 0.0
        %943 = vmatpush2.msra.mxu0 0.0
        %944 = vmatprep.subr.mxu0 0.0
        %945 = vmatpush2.msra.mxu0 0.0
        %946 = vmatprep.subr.mxu0 0.0
        %947 = vmatpush2.msra.mxu0 0.0
        %948 = vmatprep.subr.mxu0 0.0
        %949 = vmatpush2.msra.mxu0 0.0
        %950 = vmatprep.subr.mxu0 0.0
        %951 = vmatpush2.msra.mxu0 0.0
        %952 = vmatprep.subr.mxu0 0.0
        %953 = vmatpush2.msra.mxu0 0.0
        %954 = vmatprep.subr.mxu0 0.0
        %955 = vmatpush2.msra.mxu0 0.0
        %956 = vmatprep.subr.mxu0 0.0
        %957 = vmatpush2.msra.mxu0 0.0
        %958 = vmatprep.subr.mxu0 0.0
        %959 = vmatpush2.msra.mxu0 0.0
        %960 = vmatprep.subr.mxu0 0.0
        %961 = vmatpush2.msra.mxu0 0.0
        %962 = vmatprep.subr.mxu0 0.0
        %963 = vmatpush2.msra.mxu0 0.0
        %964 = vmatprep.subr.mxu0 0.0
        %965 = vmatpush2.msra.mxu0 0.0
        %966 = vmatprep.mubr.f32.mxu0 0.0
        %967 = vmatmul.mubr.f32.gmra.mxu0 %v713
        %v968 = vpop.f32.mrf.mxu0
        %v969 = vadd.f32 0.0, %v968
        %v970 = vpop.f32.mrf.mxu0
        %971 = vdwg.mxu0
        %v972 = vadd.f32 %v883, %v969
        %v973 = vld [vmem:[%s8] sm:$0x1]
        %v975 = vlaneseq
        %v976 = vshrl.u32 %v975, 7
        %v977 = vsub.s32 0, %v976
        %v978 = vrot.slane %v973, %v977
        %v980 = vadd.f32 %v972, %v978
        %v981 = vadd.f32 %v980, %v437
        %982 = vst [vmem:[%s434] sm:$0xff] %v981
        %s983 = sand.u32 %s231, 1
        %s984 = scalar_lea.sflag [#allocation5], %s983
        %s985 = sand.u32 %s231, 1
        %s986 = smul.addr %s985, 8
        %s987 = scalar_lea.vmem [#allocation15], %s986
        // Predicated region
        $region85: #{tpu_custom_call.1} parent=55 // pred_check
          %p988 = pneg %p241
        $region86: #{tpu_custom_call.1} parent=55 // pred_check_branch
          %990 = sbr.rel (%p988) target = $region88
        $region87: #{tpu_custom_call.1} parent=55 // pred_region
          %s992 = ssub.s32 128, 128
          %993 = vsyncadd %s984, %s992
          %s994 = smul.addr %s29, 128
          %s995 = scalar_lea.hbm %s9, %s994
          %s997 = sshll.u32 %s987, 4
          %s998 = int_to_ptr.vmem [resolvable:$true] %s997
          %1000 = dma.vmem_to_hbm [thread:$0]  %s998, 128, %s995, %s984
        $region88: #{tpu_custom_call.1} parent=55 // pred_fallthru
          _
      $region56: #{tpu_custom_call.1} parent=5 // pred_fallthru
        _
      %p1001 = scmp.le.s32.totalorder 2, %s24
      // Predicated region
      $region89: #{tpu_custom_call.1} parent=5 // pred_check
        %p1002 = pneg %p1001
      $region90: #{tpu_custom_call.1} parent=5 // pred_check_branch
        %1004 = sbr.rel (%p1002) target = $region92
      $region91: #{tpu_custom_call.1} parent=5 // pred_region
        %s1005 = ssub.s32 %s24, 2
        // Predicated region
        $region93: #{tpu_custom_call.1} parent=91 // pred_check
          %p1006 = pneg %p247
        $region94: #{tpu_custom_call.1} parent=91 // pred_check_branch
          %1008 = sbr.rel (%p1006) target = $region96
        $region95: #{tpu_custom_call.1} parent=91 // pred_region
          %s1009 = sand.u32 %s232, 1
          %s1010 = scalar_lea.sflag [#allocation5], %s1009
          %s1011 = sand.u32 %s232, 1
          %s1012 = smul.addr %s1011, 8
          %s1013 = scalar_lea.vmem [#allocation15], %s1012
          %1014 = dma.done %s1010, 128
        $region96: #{tpu_custom_call.1} parent=91 // pred_fallthru
          _
      $region92: #{tpu_custom_call.1} parent=5 // pred_fallthru
        _
    $region6: #{tpu_custom_call.1} parent=1 // loop_footer
      %s28 = sadd.s32 1, %s24
    $region7: #{tpu_custom_call.1} parent=1 // loop_footer_branch
      %23 = sbr.rel target = $region3
    $region8: #{tpu_custom_call.1} parent=1 // loop_exit
      _
    %1015 = vsyncpa [#allocation4], 1
    %s1016 = scalar_lea.sflag [#allocation4], 1
    %1017 = vsyncpa %s1016, 1
    %1018 = vsyncpa [#allocation7], 1
    %1019 = vsyncpa [#allocation10], 1
    %1020 = vsyncpa [#allocation13], 1
    %1021 = vsyncpa [#allocation5], 1
    %s1022 = scalar_lea.sflag [#allocation5], 1
    %1023 = vsyncpa %s1022, 1

</llo_original>
